<compile_context>
chip_gen: v6e
topology: v6e:2x2x1
jax: 0.10.0
libtpu: 0.0.40
codegen_flags: <defaults>
</compile_context>

<pallas_src>
import jax
import jax.numpy as jnp
from jax import lax
from jax.experimental import pallas as pl
from jax.experimental.pallas import tpu as pltpu


def _round_up(x, m):
    return (x + m - 1) // m * m


def _largest_divisor_leq(n, cap):
    cap = max(1, min(n, cap))
    for d in range(cap, 0, -1):
        if n % d == 0:
            return d
    return 1


def _pick_hw_tile(hw):
    """Largest lane-dense tile (multiple of 128, <= 2048) dividing hw, else full hw."""
    for cand in (2048, 1024, 512, 256, 128):
        if hw % cand == 0:
            return cand
    return hw  # full extent (small / ragged spatial) — still a legal block


def _conv1x1_bn_relu_kernel(x_ref, w_ref, scale_ref, shift_ref, o_ref):
    """Per grid step: out[b] = relu(scale * (W @ x[b]) + shift) over a batch tile.

    x_ref:     (b_tile, Cin, t_hw)   bf16
    w_ref:     (Cout, Cin)           bf16, resident in VMEM
    scale_ref: (Cout, 1)             f32, resident
    shift_ref: (Cout, 1)             f32, resident
    o_ref:     (b_tile, Cout, t_hw)
    """
    w = w_ref[...]
    scale = scale_ref[...]
    shift = shift_ref[...]
    for b in range(x_ref.shape[0]):          # static unroll over the batch tile
        acc = jnp.dot(w, x_ref[b], preferred_element_type=jnp.float32)
        y = acc * scale + shift              # fused conv-bias + inference BN
        o_ref[b] = jnp.maximum(y, 0.0).astype(o_ref.dtype)


def conv1x1_bn_relu(x_nchw, weight_oihw, bias, gamma, beta,
                    running_mean, running_var, *,
                    stride=1, padding=0, eps=1e-5,
                    compute_dtype=jnp.bfloat16, out_dtype=None):
    """Forward pass of CONV_1x1 (Conv2d k=1 -> BN -> ReLU). NCHW in / NCHW out."""
    if isinstance(padding, str):
        if padding == "same":
            assert stride == 1, "'same' padding requires stride=1"
            p = 0  # kernel_size == 1 -> 'same' padding is 0
        elif padding == "valid":
            p = 0
        else:
            raise Exception("padding should be either same or valid")
    else:
        p = int(padding)

    N, Cin, H, W = x_nchw.shape
    Cout, Cin_w, KH, KW = weight_oihw.shape
    assert KH == 1 and KW == 1 and Cin_w == Cin
    out_dtype = x_nchw.dtype if out_dtype is None else out_dtype

    # ---- NCHW-native preprocessing: no layout transposes ----
    x = x_nchw
    if p > 0:
        x = jnp.pad(x, ((0, 0), (0, 0), (p, p), (p, p)))
    if stride > 1:
        x = x[:, :, ::stride, ::stride]
    Ho, Wo = x.shape[2], x.shape[3]
    HW = Ho * Wo

    # Channels only padded to a sublane multiple (8) when not already aligned
    # (a no-op for VGG channel counts, so x is not copied in the common case).
    Cin_p = _round_up(Cin, 8)
    Cout_p = _round_up(Cout, 8)

    x = x.reshape(N, Cin, HW).astype(compute_dtype)
    if Cin_p != Cin:
        x = jnp.pad(x, ((0, 0), (0, Cin_p - Cin), (0, 0)))

    w2d = weight_oihw.reshape(Cout, Cin).astype(compute_dtype)
    if (Cout_p != Cout) or (Cin_p != Cin):
        w2d = jnp.pad(w2d, ((0, Cout_p - Cout), (0, Cin_p - Cin)))

    # Fold conv bias + inference-mode BatchNorm into per-channel scale / shift.
    inv_std = lax.rsqrt(running_var.astype(jnp.float32) + eps)
    scale = gamma.astype(jnp.float32) * inv_std
    bvec = (jnp.zeros((Cout,), jnp.float32) if bias is None
            else bias.astype(jnp.float32))
    shift = scale * (bvec - running_mean.astype(jnp.float32)) + beta.astype(jnp.float32)
    scale = jnp.pad(scale, (0, Cout_p - Cout)).reshape(Cout_p, 1)
    shift = jnp.pad(shift, (0, Cout_p - Cout)).reshape(Cout_p, 1)

    # ---- tiling ----
    t_hw = _pick_hw_tile(HW)
    in_bytes = jnp.dtype(compute_dtype).itemsize
    out_bytes = jnp.dtype(out_dtype).itemsize
    per_image = Cin_p * t_hw * in_bytes + Cout_p * t_hw * out_bytes
    budget = 3 * 1024 * 1024               # per-buffer budget; Pallas double-buffers
    b_cap = max(1, min(8, budget // max(1, per_image)))
    if N >= 2:
        b_cap = min(b_cap, N // 2)          # keep >=2 steps on the batch axis (v7x megacore)
    b_tile = _largest_divisor_leq(N, b_cap)

    grid = (N // b_tile, HW // t_hw)

    out3 = pl.pallas_call(
        _conv1x1_bn_relu_kernel,
        out_shape=jax.ShapeDtypeStruct((N, Cout_p, HW), out_dtype),
        grid_spec=pltpu.PrefetchScalarGridSpec(
            num_scalar_prefetch=0,
            grid=grid,
            in_specs=[
                pl.BlockSpec((b_tile, Cin_p, t_hw), lambda b, s: (b, 0, s)),
                pl.BlockSpec((Cout_p, Cin_p), lambda b, s: (0, 0)),   # resident weight
                pl.BlockSpec((Cout_p, 1), lambda b, s: (0, 0)),       # resident scale
                pl.BlockSpec((Cout_p, 1), lambda b, s: (0, 0)),       # resident shift
            ],
            out_specs=pl.BlockSpec((b_tile, Cout_p, t_hw), lambda b, s: (b, 0, s)),
        ),
        compiler_params=pltpu.CompilerParams(
            dimension_semantics=("parallel", "parallel")),
    )(x, w2d, scale, shift)

    out = out3[:, :Cout, :] if Cout_p != Cout else out3
    return out.reshape(N, Cout, Ho, Wo)


def _reference(x_nchw, weight_oihw, bias, gamma, beta, mean, var, *,
               stride=1, padding=0, eps=1e-5):
    p = 0 if isinstance(padding, str) else int(padding)
    x = jnp.transpose(x_nchw, (0, 2, 3, 1)).astype(jnp.float32)
    w = jnp.transpose(weight_oihw, (2, 3, 1, 0)).astype(jnp.float32)
    y = lax.conv_general_dilated(
        x, w, window_strides=(stride, stride), padding=[(p, p), (p, p)],
        dimension_numbers=("NHWC", "HWIO", "NHWC"))
    if bias is not None:
        y = y + bias
    y = gamma * (y - mean) / jnp.sqrt(var + eps) + beta
    y = jnp.maximum(y, 0.0)
    return jnp.transpose(y, (0, 3, 1, 2))


if __name__ == "__main__":
    # CONV_1x1(inplanes=4, outplanes=8, stride, padding, bias=True)
    key = jax.random.PRNGKey(0)
    kx, kw, kb, kg, kbeta, km, kv = jax.random.split(key, 7)

    N, Cin, H, W = 2, 4, 16, 16
    Cout = 8

    x = jax.random.normal(kx, (N, Cin, H, W), jnp.float32)
    weight = jax.random.normal(kw, (Cout, Cin, 1, 1), jnp.float32) * 0.1
    bias = jax.random.normal(kb, (Cout,), jnp.float32) * 0.1
    gamma = 1.0 + 0.1 * jax.random.normal(kg, (Cout,), jnp.float32)
    beta = 0.1 * jax.random.normal(kbeta, (Cout,), jnp.float32)
    running_mean = 0.1 * jax.random.normal(km, (Cout,), jnp.float32)
    running_var = jnp.abs(jax.random.normal(kv, (Cout,), jnp.float32)) + 0.5

    # stride=1, padding=0
    out = conv1x1_bn_relu(x, weight, bias, gamma, beta,
                          running_mean, running_var,
                          stride=1, padding=0)
    out = jax.block_until_ready(out)
    ref = _reference(x, weight, bias, gamma, beta, running_mean, running_var,
                     stride=1, padding=0)
    assert out.shape == (N, Cout, H, W), out.shape
    assert jnp.allclose(out, ref, rtol=2e-2, atol=2e-2), \
        float(jnp.max(jnp.abs(out - ref)))

    # stride=2, padding=0 (exercise the stride path / ragged spatial tile)
    out2 = conv1x1_bn_relu(x, weight, bias, gamma, beta,
                           running_mean, running_var,
                           stride=2, padding=0)
    out2 = jax.block_until_ready(out2)
    ref2 = _reference(x, weight, bias, gamma, beta, running_mean, running_var,
                      stride=2, padding=0)
    assert out2.shape == (N, Cout, H // 2, W // 2), out2.shape
    assert jnp.allclose(out2, ref2, rtol=2e-2, atol=2e-2), \
        float(jnp.max(jnp.abs(out2 - ref2)))

    print("KERNEL_OK")
</pallas_src>

<mosaic_0001>
module attributes {stable_mosaic.version = 11 : i64} {
  func.func @_conv1x1_bn_relu_kernel(%arg0: i32, %arg1: i32, %arg2: memref<1x8x256xbf16, #tpu.memory_space<vmem>>, %arg3: memref<8x8xbf16, #tpu.memory_space<vmem>>, %arg4: memref<8x1xf32, #tpu.memory_space<vmem>>, %arg5: memref<8x1xf32, #tpu.memory_space<vmem>>, %arg6: memref<1x8x256xf32, #tpu.memory_space<vmem>>) attributes {dimension_semantics = [#tpu.dimension_semantics<parallel>, #tpu.dimension_semantics<parallel>], iteration_bounds = array<i64: 2, 1>, scalar_prefetch = 0 : i64, scratch_operands = 0 : i64, tpu.core_type = #tpu.core_type<tc>, window_params = [{transform_indices = @transform_0, window_bounds = array<i64: 1, 8, 256>}, {pipeline_mode = #tpu.pipeline_mode<synchronous>, transform_indices = @transform_1, window_bounds = array<i64: 8, 8>}, {pipeline_mode = #tpu.pipeline_mode<synchronous>, transform_indices = @transform_2, window_bounds = array<i64: 8, 1>}, {pipeline_mode = #tpu.pipeline_mode<synchronous>, transform_indices = @transform_3, window_bounds = array<i64: 8, 1>}, {transform_indices = @transform_4, window_bounds = array<i64: 1, 8, 256>}]} {
    %c0 = arith.constant 0 : index
    %c0_0 = arith.constant 0 : index
    %0 = vector.load %arg3[%c0, %c0_0] : memref<8x8xbf16, #tpu.memory_space<vmem>>, vector<8x8xbf16>
    %c0_1 = arith.constant 0 : index
    %c0_2 = arith.constant 0 : index
    %1 = vector.load %arg4[%c0_1, %c0_2] : memref<8x1xf32, #tpu.memory_space<vmem>>, vector<8x1xf32>
    %c0_3 = arith.constant 0 : index
    %c0_4 = arith.constant 0 : index
    %2 = vector.load %arg5[%c0_3, %c0_4] : memref<8x1xf32, #tpu.memory_space<vmem>>, vector<8x1xf32>
    %c0_5 = arith.constant 0 : index
    %c0_6 = arith.constant 0 : index
    %c0_7 = arith.constant 0 : index
    %3 = vector.load %arg2[%c0_5, %c0_6, %c0_7] : memref<1x8x256xbf16, #tpu.memory_space<vmem>>, vector<1x8x256xbf16>
    %4 = vector.shape_cast %3 : vector<1x8x256xbf16> to vector<8x256xbf16>
    %cst = arith.constant dense<0.000000e+00> : vector<8x256xf32>
    %5 = tpu.matmul %0, %4, %cst {dimension_numbers = #tpu.dot_dimension_numbers<[1], [0], [0], [1], [0, 0, 1, 1], [], []>} : vector<8x8xbf16>, vector<8x256xbf16>, vector<8x256xf32> -> vector<8x256xf32>
    %6 = vector.broadcast %1 : vector<8x1xf32> to vector<8x256xf32>
    %7 = arith.mulf %5, %6 : vector<8x256xf32>
    %8 = vector.broadcast %2 : vector<8x1xf32> to vector<8x256xf32>
    %9 = arith.addf %7, %8 : vector<8x256xf32>
    %cst_8 = arith.constant 0.000000e+00 : f32
    %10 = vector.broadcast %cst_8 : f32 to vector<8x256xf32>
    %11 = arith.maximumf %9, %10 : vector<8x256xf32>
    %c0_9 = arith.constant 0 : index
    %c0_10 = arith.constant 0 : index
    %c0_11 = arith.constant 0 : index
    %12 = vector.load %arg6[%c0_9, %c0_10, %c0_11] : memref<1x8x256xf32, #tpu.memory_space<vmem>>, vector<1x8x256xf32>
    %13 = vector.shape_cast %12 : vector<1x8x256xf32> to vector<8x256xf32>
    %14 = vector.shape_cast %11 : vector<8x256xf32> to vector<1x8x256xf32>
    tpu.vector_store %arg6[%c0_9, %c0_10, %c0_11], %14 {strides = array<i32>} : memref<1x8x256xf32, #tpu.memory_space<vmem>>, vector<1x8x256xf32>,
    return
  }
  func.func @transform_0(%arg0: i32, %arg1: i32) -> (i32, i32, i32) {
    %c0_i32 = arith.constant 0 : i32
    %c0_i32_0 = arith.constant 0 : i32
    return %arg0, %c0_i32, %arg1 : i32, i32, i32
  }
  func.func @transform_1(%arg0: i32, %arg1: i32) -> (i32, i32) {
    %c0_i32 = arith.constant 0 : i32
    %c0_i32_0 = arith.constant 0 : i32
    %c0_i32_1 = arith.constant 0 : i32
    return %c0_i32, %c0_i32_0 : i32, i32
  }
  func.func @transform_2(%arg0: i32, %arg1: i32) -> (i32, i32) {
    %c0_i32 = arith.constant 0 : i32
    %c0_i32_0 = arith.constant 0 : i32
    %c0_i32_1 = arith.constant 0 : i32
    return %c0_i32, %c0_i32_0 : i32, i32
  }
  func.func @transform_3(%arg0: i32, %arg1: i32) -> (i32, i32) {
    %c0_i32 = arith.constant 0 : i32
    %c0_i32_0 = arith.constant 0 : i32
    %c0_i32_1 = arith.constant 0 : i32
    return %c0_i32, %c0_i32_0 : i32, i32
  }
  func.func @transform_4(%arg0: i32, %arg1: i32) -> (i32, i32, i32) {
    %c0_i32 = arith.constant 0 : i32
    %c0_i32_0 = arith.constant 0 : i32
    return %arg0, %c0_i32, %arg1 : i32, i32, i32
  }
}

</mosaic_0001>

<llo_original>
// kernel: tpu_custom_call.1
$region0: #{tpu_custom_call.1}
  #allocation0 [shape = 'u32[]', space=smem, size = 0x4, offset = 0x4, fixed_abs, tag = 'smem constant byte address 0x4 - core index']
  #allocation1 [shape = 'u32[144,128]{1,0:T(1,128)}', space=vmem, size = 0x12000, scoped, tag = 'internal scratch']
  %s0 = inlined_call_operand.vmem [shape: bf16[2,8,256], index: 0, kind: input, shape index: {}]
  %s1 = inlined_call_operand.hbm [shape: bf16[8,8], index: 1, kind: input, shape index: {}]
  %s2 = inlined_call_operand.vmem [shape: f32[8,1], index: 2, kind: input, shape index: {}]
  %s3 = inlined_call_operand.vmem [shape: f32[8,1], index: 3, kind: input, shape index: {}]
  %s4 = inlined_call_operand.hbm [shape: f32[2,8,256], index: 4, kind: output, shape index: {}]
  %s5 = sld [smem:[#allocation0]]
  $region53: #{tpu_custom_call.1} parent=0
    _
  %s7 = ssub.s32 1, %s5
  %s8 = scalar_select 0, %s7, %s5
  $region1: #{tpu_custom_call.1} parent=0
    #allocation2 [shape = 'u8[2048]{0}', space=vmem, size = 0x800, scoped, tag = 'input window, operand 1, single buffered']
    #allocation3 [shape = 's32[2]{0}', space=sflag, size = 0x8, scoped, tag = 'scoped memory for tpu_custom_call.1']
    #allocation4 [shape = 's32[2]{0}', space=sflag, size = 0x8, scoped, tag = 'scoped memory for tpu_custom_call.1']
    #allocation5 [shape = 'u8[16384]{0}', space=vmem, size = 0x4000, scoped, tag = 'output window, operand 0']
    %9 = vsyncpa [#allocation3], 0
    %10 = vsyncpa [#allocation4], 0
    %s11 = scalar_lea.sflag [#allocation4], 1
    %12 = vsyncpa %s11, 0
    loop: start=0, step=1, limit=4
    $region2: #{tpu_custom_call.1} parent=1 // loop_pre_header
      _
    $region3: #{tpu_custom_call.1} parent=1 // loop_header
      %s14 = sphi 0, %s18
      %p15 = scmp.ge.s32.totalorder %s14, 4
      %s21 = sphi 0, %s33
      %s22 = sphi 0, %s29
      %s23 = sphi 0, %s21
      %s24 = sphi 0, %s22
      %s25 = sphi 0, %s23
      %s26 = sphi 0, %s24
      %s38 = sphi 0, %s40
      %s41 = sphi 0, %s38
      %s42 = sphi 0, %s41
      %s58 = sphi 0, %s42
      %s62 = sphi 0, %s62
      %s64 = sphi 0, %s62
      %s65 = sphi 0, %s64
      %s79 = sphi 0, %s65
      %s83 = sphi 0, %s83
      %s85 = sphi 0, %s83
      %s86 = sphi 0, %s85
      %s100 = sphi 0, %s86
      %s104 = sphi 0, %s104
      %s106 = sphi 0, %s104
      %s107 = sphi 0, %s106
      %s121 = sphi 0, %s107
      %s129 = sphi 0, %s131
      %s132 = sphi 0, %s129
      %s133 = sphi 0, %s132
      %s149 = sphi 0, %s133
    $region4: #{tpu_custom_call.1} parent=1 // loop_header_branch
      %17 = sbr.rel (%p15) target = $region8
    $region5: #{tpu_custom_call.1} parent=1 // loop_body
      %s19 = ssub.s32 %s14, 1
      %s20 = ssub.s32 %s14, 2
      %s27 = sadd.s32 1, %s22
      %p28 = scmp.ge.s32.totalorder %s27, 1
      %s29 = scalar_select %p28, 0, %s27
      %s30 = sadd.s32 1, %s21
      %s31 = scalar_select %p28, %s30, %s21
      %p32 = scmp.ge.s32.totalorder %s31, 2
      %s33 = scalar_select %p32, 0, %s31
      %s34 = ssub.s32 %s21, %s33
      %s35 = ssub.s32 %s22, %s29
      %s36 = sor.u32 %s34, %s35
      %p37 = scmp.eq.s32.totalorder %s36, 0
      %s39 = sadd.s32 %s38, 1
      %s40 = scalar_select %p37, %s38, %s39
      %p43 = pneg %p37
      %p44 = scmp.eq.s32.totalorder %s14, 1
      %p45 = por %p43, %p44
      %p46 = scmp.ne.s32.totalorder %s38, %s41
      %p47 = scmp.eq.s32.totalorder %s14, 0
      %p48 = por %p46, %p47
      %p49 = scmp.ne.s32.totalorder %s38, %s41
      %p50 = scmp.eq.s32.totalorder %s19, 1
      %p51 = por %p49, %p50
      %p52 = scmp.ne.s32.totalorder %s41, %s42
      %p53 = scmp.eq.s32.totalorder %s19, 0
      %p54 = por %p52, %p53
      %p55 = scmp.ne.s32.totalorder %s41, %s42
      %p56 = scmp.eq.s32.totalorder %s20, 1
      %p57 = por %p55, %p56
      %p59 = scmp.ne.s32.totalorder %s42, %s58
      %p60 = scmp.eq.s32.totalorder %s20, 0
      %p61 = por %p59, %p60
      %s63 = sadd.s32 %s62, 1
      %p66 = scmp.eq.s32.totalorder %s14, 1
      %p67 = scmp.ne.s32.totalorder %s62, %s64
      %p68 = scmp.eq.s32.totalorder %s14, 0
      %p69 = por %p67, %p68
      %p70 = scmp.ne.s32.totalorder %s62, %s64
      %p71 = scmp.eq.s32.totalorder %s19, 1
      %p72 = por %p70, %p71
      %p73 = scmp.ne.s32.totalorder %s64, %s65
      %p74 = scmp.eq.s32.totalorder %s19, 0
      %p75 = por %p73, %p74
      %p76 = scmp.ne.s32.totalorder %s64, %s65
      %p77 = scmp.eq.s32.totalorder %s20, 1
      %p78 = por %p76, %p77
      %p80 = scmp.ne.s32.totalorder %s65, %s79
      %p81 = scmp.eq.s32.totalorder %s20, 0
      %p82 = por %p80, %p81
      %s84 = sadd.s32 %s83, 1
      %p87 = scmp.eq.s32.totalorder %s14, 1
      %p88 = scmp.ne.s32.totalorder %s83, %s85
      %p89 = scmp.eq.s32.totalorder %s14, 0
      %p90 = por %p88, %p89
      %p91 = scmp.ne.s32.totalorder %s83, %s85
      %p92 = scmp.eq.s32.totalorder %s19, 1
      %p93 = por %p91, %p92
      %p94 = scmp.ne.s32.totalorder %s85, %s86
      %p95 = scmp.eq.s32.totalorder %s19, 0
      %p96 = por %p94, %p95
      %p97 = scmp.ne.s32.totalorder %s85, %s86
      %p98 = scmp.eq.s32.totalorder %s20, 1
      %p99 = por %p97, %p98
      %p101 = scmp.ne.s32.totalorder %s86, %s100
      %p102 = scmp.eq.s32.totalorder %s20, 0
      %p103 = por %p101, %p102
      %s105 = sadd.s32 %s104, 1
      %p108 = scmp.eq.s32.totalorder %s14, 1
      %p109 = scmp.ne.s32.totalorder %s104, %s106
      %p110 = scmp.eq.s32.totalorder %s14, 0
      %p111 = por %p109, %p110
      %p112 = scmp.ne.s32.totalorder %s104, %s106
      %p113 = scmp.eq.s32.totalorder %s19, 1
      %p114 = por %p112, %p113
      %p115 = scmp.ne.s32.totalorder %s106, %s107
      %p116 = scmp.eq.s32.totalorder %s19, 0
      %p117 = por %p115, %p116
      %p118 = scmp.ne.s32.totalorder %s106, %s107
      %p119 = scmp.eq.s32.totalorder %s20, 1
      %p120 = por %p118, %p119
      %p122 = scmp.ne.s32.totalorder %s107, %s121
      %p123 = scmp.eq.s32.totalorder %s20, 0
      %p124 = por %p122, %p123
      %s125 = ssub.s32 %s21, %s33
      %s126 = ssub.s32 %s22, %s29
      %s127 = sor.u32 %s125, %s126
      %p128 = scmp.eq.s32.totalorder %s127, 0
      %s130 = sadd.s32 %s129, 1
      %s131 = scalar_select %p128, %s129, %s130
      %p134 = pneg %p128
      %p135 = scmp.eq.s32.totalorder %s14, 1
      %p136 = por %p134, %p135
      %p137 = scmp.ne.s32.totalorder %s129, %s132
      %p138 = scmp.eq.s32.totalorder %s14, 0
      %p139 = por %p137, %p138
      %p140 = scmp.ne.s32.totalorder %s129, %s132
      %p141 = scmp.eq.s32.totalorder %s19, 1
      %p142 = por %p140, %p141
      %p143 = scmp.ne.s32.totalorder %s132, %s133
      %p144 = scmp.eq.s32.totalorder %s19, 0
      %p145 = por %p143, %p144
      %p146 = scmp.ne.s32.totalorder %s132, %s133
      %p147 = scmp.eq.s32.totalorder %s20, 1
      %p148 = por %p146, %p147
      %p150 = scmp.ne.s32.totalorder %s133, %s149
      %p151 = scmp.eq.s32.totalorder %s20, 0
      %p152 = por %p150, %p151
      %p153 = scmp.le.s32.totalorder 1, %s14
      %p154 = scmp.lt.s32.totalorder %s14, 3
      %p155 = pnand %p153, %p154
      %p156 = pneg %p155
      // Predicated region
      $region9: #{tpu_custom_call.1} parent=5 // pred_check
        _
      $region10: #{tpu_custom_call.1} parent=5 // pred_check_branch
        %158 = sbr.rel (%p155) target = $region12
      $region11: #{tpu_custom_call.1} parent=5 // pred_region
        %s159 = ssub.s32 %s14, 1
        // Predicated region
        $region13: #{tpu_custom_call.1} parent=11 // pred_check
          %p160 = pneg %p75
        $region14: #{tpu_custom_call.1} parent=11 // pred_check_branch
          %162 = sbr.rel (%p160) target = $region16
        $region15: #{tpu_custom_call.1} parent=11 // pred_region
          %s164 = ssub.s32 64, 64
          %165 = vsyncadd [#allocation3], %s164
          %s167 = sshll.u32 [#allocation2], 4
          %s168 = int_to_ptr.vmem [resolvable:$true] %s167
          %170 = dma.hbm_to_vmem [thread:$0]  %s1, 64, %s168, [#allocation3]
        $region16: #{tpu_custom_call.1} parent=11 // pred_fallthru
          _
        // Predicated region
        $region17: #{tpu_custom_call.1} parent=11 // pred_check
          %p171 = pneg %p96
        $region18: #{tpu_custom_call.1} parent=11 // pred_check_branch
          %173 = sbr.rel (%p171) target = $region20
        $region19: #{tpu_custom_call.1} parent=11 // pred_region
          _
        $region20: #{tpu_custom_call.1} parent=11 // pred_fallthru
          _
        // Predicated region
        $region21: #{tpu_custom_call.1} parent=11 // pred_check
          %p174 = pneg %p117
        $region22: #{tpu_custom_call.1} parent=11 // pred_check_branch
          %176 = sbr.rel (%p174) target = $region24
        $region23: #{tpu_custom_call.1} parent=11 // pred_region
          _
        $region24: #{tpu_custom_call.1} parent=11 // pred_fallthru
          _
      $region12: #{tpu_custom_call.1} parent=5 // pred_fallthru
        _
      %p177 = scmp.lt.s32.totalorder %s14, 2
      // Predicated region
      $region25: #{tpu_custom_call.1} parent=5 // pred_check
        %p178 = pneg %p177
      $region26: #{tpu_custom_call.1} parent=5 // pred_check_branch
        %180 = sbr.rel (%p178) target = $region28
      $region27: #{tpu_custom_call.1} parent=5 // pred_region
        // Predicated region
        $region29: #{tpu_custom_call.1} parent=27 // pred_check
          %p181 = pneg %p48
        $region30: #{tpu_custom_call.1} parent=27 // pred_check_branch
          %183 = sbr.rel (%p181) target = $region32
        $region31: #{tpu_custom_call.1} parent=27 // pred_region
          %s184 = smul.u32 2, %s22
          %p185 = scmp.lt.s32.totalorder %s21, 1
          %s186 = scalar_select %p185, %s21, 1
          %p187 = scmp.lt.s32.totalorder %s184, 1
          %s188 = scalar_select %p187, %s184, 1
          %s189 = smul.addr %s186, 2
          %s190 = sadd.s32 %s188, %s189
          %s191 = smul.addr %s190, 4
          %s192 = scalar_lea.vmem %s0, %s191
          %s193 = smul.u32 2, %s22
        $region32: #{tpu_custom_call.1} parent=27 // pred_fallthru
          _
      $region28: #{tpu_custom_call.1} parent=5 // pred_fallthru
        _
      %p194 = scmp.le.s32.totalorder 1, %s14
      %p195 = scmp.lt.s32.totalorder %s14, 3
      %p196 = pnand %p194, %p195
      %p197 = pneg %p196
      // Predicated region
      $region33: #{tpu_custom_call.1} parent=5 // pred_check
        _
      $region34: #{tpu_custom_call.1} parent=5 // pred_check_branch
        %199 = sbr.rel (%p196) target = $region36
      $region35: #{tpu_custom_call.1} parent=5 // pred_region
        %s200 = ssub.s32 %s14, 1
        // Predicated region
        $region37: #{tpu_custom_call.1} parent=35 // pred_check
          %p201 = pneg %p75
        $region38: #{tpu_custom_call.1} parent=35 // pred_check_branch
          %203 = sbr.rel (%p201) target = $region40
        $region39: #{tpu_custom_call.1} parent=35 // pred_region
          %204 = dma.done [#allocation3], 64
        $region40: #{tpu_custom_call.1} parent=35 // pred_fallthru
          _
        %s205 = smul.u32 2, %s24
        %p206 = scmp.lt.s32.totalorder %s23, 1
        %s207 = scalar_select %p206, %s23, 1
        %p208 = scmp.lt.s32.totalorder %s205, 1
        %s209 = scalar_select %p208, %s205, 1
        %s210 = smul.addr %s207, 2
        %s211 = sadd.s32 %s209, %s210
        %s212 = smul.addr %s211, 4
        %s213 = scalar_lea.vmem %s0, %s212
        %p214 = pneg %p54
        %p215 = pneg %p51
        %p216 = pneg %p75
        %p217 = pneg %p72
        %p218 = pneg %p96
        %p219 = pneg %p93
        %p220 = pneg %p117
        %p221 = pneg %p114
        %p222 = pneg %p145
        %p223 = pneg %p142
        %s224 = sand.u32 %s132, 1
        %s225 = scalar_lea.sflag [#allocation4], %s224
        %s226 = sand.u32 %s132, 1
        %s227 = smul.addr %s226, 16
        %s228 = scalar_lea.vmem [#allocation5], %s227
        %s229 = smul.u32 2, %s24
        %p230 = scmp.lt.s32.totalorder %s23, 1
        %s231 = scalar_select %p230, %s23, 1
        %p232 = scmp.lt.s32.totalorder %s229, 1
        %s233 = scalar_select %p232, %s229, 1
        %s234 = smul.addr %s231, 2
        %s235 = sadd.s32 %s233, %s234
        %s236 = smul.addr %s235, 4
        %s237 = scalar_lea.vmem %s0, %s236
        %s238 = smul.u32 2, %s24
        %s239 = smul.u32 2, %s24
        %v241 = vld [vmem:[#allocation2] sm:$0xf]
        %v242 = vld [vmem:[%s2] sm:$0xff]
        %v243 = vld [vmem:[%s3] sm:$0xff]
        %v244 = vld [vmem:[%s237] sm:$0xff]
        %v246 = vunpack.c.l.b16 %v244
        %v247 = vunpack.c.h.b16 %v244
        %v248 = vpack.c.b16 %v246, %v246
        %v249 = vpack.c.b16 %v247, %v247
        %vm250 = vcmask 64512
        %v252 = vsel %vm250, %v241, 0
        %vm254 = vcmask 1043456
        %v256 = vsel %vm254, %v248, 0
        %v259 = vsel %vm254, %v249, 0
        %261 = vmatprep.subr.bf16.mxu0 0
        %262 = vmatpush1.bf16.msra.mxu0 0
        %263 = vmatprep.subr.bf16.mxu0 0
        %264 = vmatpush1.bf16.msra.mxu0 0
        %265 = vmatprep.subr.bf16.mxu0 0
        %266 = vmatpush1.bf16.msra.mxu0 0
        %267 = vmatprep.subr.bf16.mxu0 0
        %268 = vmatpush1.bf16.msra.mxu0 0
        %269 = vmatprep.subr.bf16.mxu0 0
        %270 = vmatpush1.bf16.msra.mxu0 0
        %271 = vmatprep.subr.bf16.mxu0 0
        %272 = vmatpush1.bf16.msra.mxu0 0
        %273 = vmatprep.subr.bf16.mxu0 0
        %274 = vmatpush1.bf16.msra.mxu0 0
        %275 = vmatprep.subr.bf16.mxu0 %v259
        %276 = vmatpush1.bf16.msra.mxu0 %v256
        %277 = vmatprep.subr.bf16.mxu0 0
        %278 = vmatpush2.bf16.msra.mxu0 0
        %279 = vmatprep.subr.bf16.mxu0 0
        %280 = vmatpush2.bf16.msra.mxu0 0
        %281 = vmatprep.subr.bf16.mxu0 0
        %282 = vmatpush2.bf16.msra.mxu0 0
        %283 = vmatprep.subr.bf16.mxu0 0
        %284 = vmatpush2.bf16.msra.mxu0 0
        %285 = vmatprep.subr.bf16.mxu0 0
        %286 = vmatpush2.bf16.msra.mxu0 0
        %287 = vmatprep.subr.bf16.mxu0 0
        %288 = vmatpush2.bf16.msra.mxu0 0
        %289 = vmatprep.subr.bf16.mxu0 0
        %290 = vmatpush2.bf16.msra.mxu0 0
        %291 = vmatprep.subr.bf16.mxu0 0
        %292 = vmatpush2.bf16.msra.mxu0 0
        %293 = vmatprep.mubr.bf16.mxu0 0
        %294 = vmatmul.mubr.bf16.gmra.mxu0 %v252
        %v295 = vpop.f32.mrf.mxu0
        %v296 = vadd.f32 0.0, %v295
        %v297 = vpop.f32.mrf.mxu0
        %v298 = vadd.f32 0.0, %v297
        %v299 = vpop.f32.mrf.mxu0
        %v300 = vpop.f32.mrf.mxu0
        %301 = vdwg.mxu0
        %303 = vset.pattern.permute.xlu0 0
        %304 = vperm.xlu0 %303, %v242
        %v305 = vpop.permute.xlu0 %304
        %v307 = vmul.f32 %v296, %v305
        %v308 = vmul.f32 %v298, %v305
        %310 = vset.pattern.permute.xlu0 0
        %311 = vperm.xlu0 %310, %v243
        %v312 = vpop.permute.xlu0 %311
        %v314 = vadd.f32 %v307, %v312
        %v315 = vadd.f32 %v308, %v312
        %v316 = vmax.f32 %v314, 0.0
        %v317 = vmax.f32 %v315, 0.0
        %318 = vst [vmem:[%s228] sm:$0xff] %v316
        %319 = vst [vmem:[%s228 + $0x8] sm:$0xff] %v317
        %s320 = sand.u32 %s132, 1
        %s321 = scalar_lea.sflag [#allocation4], %s320
        %s322 = sand.u32 %s132, 1
        %s323 = smul.addr %s322, 16
        %s324 = scalar_lea.vmem [#allocation5], %s323
        // Predicated region
        $region41: #{tpu_custom_call.1} parent=35 // pred_check
          %p325 = pneg %p142
        $region42: #{tpu_custom_call.1} parent=35 // pred_check_branch
          %327 = sbr.rel (%p325) target = $region44
        $region43: #{tpu_custom_call.1} parent=35 // pred_region
          %s328 = smul.u32 2, %s24
          %s330 = ssub.s32 256, 256
          %331 = vsyncadd %s321, %s330
          %s332 = smul.addr %s23, 2
          %s333 = sadd.s32 %s328, %s332
          %s334 = smul.addr %s333, 128
          %s335 = scalar_lea.hbm %s4, %s334
          %s337 = sshll.u32 %s324, 4
          %s338 = int_to_ptr.vmem [resolvable:$true] %s337
          %340 = dma.vmem_to_hbm [thread:$0]  %s338, 256, %s335, %s321
        $region44: #{tpu_custom_call.1} parent=35 // pred_fallthru
          _
      $region36: #{tpu_custom_call.1} parent=5 // pred_fallthru
        _
      %p341 = scmp.le.s32.totalorder 2, %s14
      // Predicated region
      $region45: #{tpu_custom_call.1} parent=5 // pred_check
        %p342 = pneg %p341
      $region46: #{tpu_custom_call.1} parent=5 // pred_check_branch
        %344 = sbr.rel (%p342) target = $region48
      $region47: #{tpu_custom_call.1} parent=5 // pred_region
        %s345 = ssub.s32 %s14, 2
        // Predicated region
        $region49: #{tpu_custom_call.1} parent=47 // pred_check
          %p346 = pneg %p148
        $region50: #{tpu_custom_call.1} parent=47 // pred_check_branch
          %348 = sbr.rel (%p346) target = $region52
        $region51: #{tpu_custom_call.1} parent=47 // pred_region
          %s349 = sand.u32 %s133, 1
          %s350 = scalar_lea.sflag [#allocation4], %s349
          %s351 = sand.u32 %s133, 1
          %s352 = smul.addr %s351, 16
          %s353 = scalar_lea.vmem [#allocation5], %s352
          %354 = dma.done %s350, 256
        $region52: #{tpu_custom_call.1} parent=47 // pred_fallthru
          _
      $region48: #{tpu_custom_call.1} parent=5 // pred_fallthru
        _
    $region6: #{tpu_custom_call.1} parent=1 // loop_footer
      %s18 = sadd.s32 1, %s14
    $region7: #{tpu_custom_call.1} parent=1 // loop_footer_branch
      %13 = sbr.rel target = $region3
    $region8: #{tpu_custom_call.1} parent=1 // loop_exit
      _
    %355 = vsyncpa [#allocation3], 1
    %s356 = scalar_lea.sflag [#allocation3], 1
    %357 = vsyncpa %s356, 1
    %358 = vsyncpa [#allocation4], 1
    %s359 = scalar_lea.sflag [#allocation4], 1
    %360 = vsyncpa %s359, 1

</llo_original>
